<compile_context>
chip_gen: v7x
topology: tpu7x:2x2x1
jax: 0.10.0
libtpu: 0.0.40
codegen_flags: <defaults>
</compile_context>

<pallas_src>
import jax
import jax.numpy as jnp
from jax.experimental import pallas as pl
from jax.experimental.pallas import tpu as pltpu

LATENT = 128
OUT_CHANNELS = 2
OUT_PAD = 128          # lane width of the in-register second matmul (weights-only padding)
BN_EPS = 1e-5


# ---------------------------------------------------------------------------
# Pallas kernel: fused Linear(+folded BN) -> ReLU -> Linear on a row tile
# ---------------------------------------------------------------------------
def _decoder_mlp_kernel(x_ref, w1_ref, b1_ref, w2_ref, b2_ref, o_ref):
    x = x_ref[...].astype(jnp.bfloat16)                        # no-op if x is already bf16
    h = jnp.dot(x, w1_ref[...], preferred_element_type=jnp.float32)
    h = h + b1_ref[...]                                        # Linear bias + folded BN (f32)
    h = jnp.maximum(h, 0.0)                                    # ReLU (f32, VPU)
    y = jnp.dot(h.astype(jnp.bfloat16), w2_ref[...],
                preferred_element_type=jnp.float32)            # lane-dense MXU matmul
    # Narrow store: only the 2 real output channels leave VMEM (8 B/row instead of 512 B/row).
    o_ref[...] = (y + b2_ref[...])[:, :OUT_CHANNELS]


# ---------------------------------------------------------------------------
# Wrapper: tiling, BN folding, BlockSpecs
# ---------------------------------------------------------------------------
def _choose_tile_m(n_rows: int) -> int:
    # Mem-bound kernel: big tiles amortize the ~0.35us/grid-step overhead (512-1024 rows
    # reach ~85% of HBM roofline on v6e).  Prefer an even tile count so v7x's 2 TensorCores
    # (single "parallel" grid axis) stay balanced; on v5e/v6e (1 TC) parity is harmless.
    if n_rows <= 128:
        return max(8, ((n_rows + 7) // 8) * 8)      # whole row dim in a single block
    candidates = (1024, 512, 256, 128)
    for t in candidates:                            # largest tile with an even tile count
        g = pl.cdiv(n_rows, t)
        if g >= 2 and g % 2 == 0:
            return t
    for t in candidates:                            # fallback: largest tile with >= 2 tiles
        if pl.cdiv(n_rows, t) >= 2:
            return t
    return 128


def decoder_forward(params, x, *, tile_m=None):
    n_rows, d_in = x.shape
    w1, b1 = params["lin1_w"], params["lin1_b"]
    w2, b2 = params["lin2_w"], params["lin2_b"]
    d_hidden = w1.shape[1]
    d_out = w2.shape[1]

    # Fold BatchNorm1d (inference) into W1/b1: a weights-only host fold, done once in f32
    # before the bf16 cast (NOT an activation pre-scale in the wrapper).
    inv = jax.lax.rsqrt(params["bn_var"] + BN_EPS)
    scale = params["bn_gamma"] * inv                                   # (d_hidden,)
    shift = params["bn_beta"] - params["bn_mean"] * scale              # (d_hidden,)
    w1_folded = w1 * scale[None, :]
    b1_folded = (b1 * scale + shift).reshape(1, d_hidden)

    # Second projection stays lane-dense for the MXU (tiny resident weight, zero extra HBM
    # output traffic now that the store is narrow).
    w2p = jnp.zeros((d_hidden, OUT_PAD), jnp.float32).at[:, :d_out].set(w2)
    b2p = jnp.zeros((1, OUT_PAD), jnp.float32).at[:, :d_out].set(b2)

    # bf16 MXU operands (accumulation stays f32 inside the kernel).
    w1_bf = w1_folded.astype(jnp.bfloat16)
    w2_bf = w2p.astype(jnp.bfloat16)

    if tile_m is None:
        tile_m = _choose_tile_m(n_rows)
    grid = (pl.cdiv(n_rows, tile_m),)          # no host pad; ragged last tile is masked

    # Advisory cost estimate: two N x 128 x 128 matmuls, true in/out byte traffic.
    weight_bytes = (w1_bf.size * 2 + w2_bf.size * 2
                    + b1_folded.size * 4 + b2p.size * 4)
    cost = pl.CostEstimate(
        flops=2 * 2 * n_rows * d_in * d_hidden,
        transcendentals=0,
        bytes_accessed=n_rows * d_in * x.dtype.itemsize     # activation read
        + n_rows * d_out * 4                                # narrow f32 output write
        + weight_bytes,
    )

    out = pl.pallas_call(
        _decoder_mlp_kernel,
        out_shape=jax.ShapeDtypeStruct((n_rows, d_out), jnp.float32),
        grid=grid,
        in_specs=[
            pl.BlockSpec((tile_m, d_in), lambda i: (i, 0)),       # x row tile
            pl.BlockSpec((d_in, d_hidden), lambda i: (0, 0)),     # W1 (BN-folded, resident)
            pl.BlockSpec((1, d_hidden), lambda i: (0, 0)),        # b1 (BN-folded)
            pl.BlockSpec((d_hidden, OUT_PAD), lambda i: (0, 0)),  # W2 (lane-padded, resident)
            pl.BlockSpec((1, OUT_PAD), lambda i: (0, 0)),         # b2 (lane-padded)
        ],
        # Narrow output block: last dim == full array dim (2), row dim is a multiple of 8.
        out_specs=pl.BlockSpec((tile_m, d_out), lambda i: (i, 0)),
        compiler_params=pltpu.CompilerParams(
            dimension_semantics=("parallel",),    # row tiles shard across v7x's 2 TCs
            vmem_limit_bytes=32 * 1024 * 1024,    # keep modest; working set is ~2-3 MiB
        ),
        cost_estimate=cost,
    )(x, w1_bf, b1_folded, w2_bf, b2p)

    return out


# ---------------------------------------------------------------------------
# Deterministic parameter initialization (fresh torch Linear / BatchNorm1d defaults)
# ---------------------------------------------------------------------------
def init_linear(key, d_in, d_out):
    kw, kb = jax.random.split(key)
    bound = 1.0 / jnp.sqrt(jnp.float32(d_in))
    w = jax.random.uniform(kw, (d_in, d_out), jnp.float32, -bound, bound)
    b = jax.random.uniform(kb, (d_out,), jnp.float32, -bound, bound)
    return w, b


def init_decoder_params(key):
    k1, k2 = jax.random.split(key)
    w1, b1 = init_linear(k1, LATENT, LATENT)
    w2, b2 = init_linear(k2, LATENT, OUT_CHANNELS)
    return {
        "lin1_w": w1, "lin1_b": b1,
        "bn_gamma": jnp.ones((LATENT,), jnp.float32),
        "bn_beta": jnp.zeros((LATENT,), jnp.float32),
        "bn_mean": jnp.zeros((LATENT,), jnp.float32),
        "bn_var": jnp.ones((LATENT,), jnp.float32),
        "lin2_w": w2, "lin2_b": b2,
    }


if __name__ == "__main__":
    key = jax.random.PRNGKey(0)
    k_param, k_x = jax.random.split(key)

    # small graph: 200 nodes with 128-dim latent features (ragged vs. the 128-row tile,
    # grid length 2 so the "parallel" axis exercises megacore sharding on v7x).
    N_NODES = 200
    x = jax.random.normal(k_x, (N_NODES, LATENT), jnp.float32)
    params = init_decoder_params(k_param)

    fwd = jax.jit(decoder_forward)
    out = fwd(params, x)
    jax.block_until_ready(out)

    # Pure-JAX reference: same bf16-rounded matmul operands + the same (mathematically
    # equivalent) BN-into-W1/b1 fold, f32 accumulation.
    def reference(params, x):
        f = lambda a: a.astype(jnp.bfloat16).astype(jnp.float32)
        inv = jax.lax.rsqrt(params["bn_var"] + BN_EPS)
        scale = params["bn_gamma"] * inv
        shift = params["bn_beta"] - params["bn_mean"] * scale
        w1f = f(params["lin1_w"] * scale[None, :])
        b1f = params["lin1_b"] * scale + shift
        h = f(x) @ w1f + b1f
        h = jnp.maximum(h, 0.0)
        return f(h) @ f(params["lin2_w"]) + params["lin2_b"]

    expected = reference(params, x)
    assert out.shape == (N_NODES, OUT_CHANNELS) and out.dtype == jnp.float32
    assert jnp.allclose(out, expected, rtol=1e-2, atol=1e-2), float(
        jnp.max(jnp.abs(out - expected)))
    print("KERNEL_OK")
</pallas_src>

<mosaic_0001>
module attributes {stable_mosaic.version = 11 : i64} {
  func.func @_decoder_mlp_kernel(%arg0: i32, %arg1: memref<128x128xf32, #tpu.memory_space<vmem>>, %arg2: memref<128x128xbf16, #tpu.memory_space<vmem>>, %arg3: memref<1x128xf32, #tpu.memory_space<vmem>>, %arg4: memref<128x128xbf16, #tpu.memory_space<vmem>>, %arg5: memref<1x128xf32, #tpu.memory_space<vmem>>, %arg6: memref<128x2xf32, #tpu.memory_space<vmem>>) attributes {dimension_semantics = [#tpu.dimension_semantics<parallel>], iteration_bounds = array<i64: 2>, scalar_prefetch = 0 : i64, scratch_operands = 0 : i64, tpu.core_type = #tpu.core_type<tc>, window_params = [{transform_indices = @transform_0, window_bounds = array<i64: 128, 128>}, {pipeline_mode = #tpu.pipeline_mode<synchronous>, transform_indices = @transform_1, window_bounds = array<i64: 128, 128>}, {pipeline_mode = #tpu.pipeline_mode<synchronous>, transform_indices = @transform_2, window_bounds = array<i64: 1, 128>}, {pipeline_mode = #tpu.pipeline_mode<synchronous>, transform_indices = @transform_3, window_bounds = array<i64: 128, 128>}, {pipeline_mode = #tpu.pipeline_mode<synchronous>, transform_indices = @transform_4, window_bounds = array<i64: 1, 128>}, {transform_indices = @transform_5, window_bounds = array<i64: 128, 2>}]} {
    %c0 = arith.constant 0 : index
    %c0_0 = arith.constant 0 : index
    %0 = vector.load %arg1[%c0, %c0_0] : memref<128x128xf32, #tpu.memory_space<vmem>>, vector<128x128xf32>
    %1 = arith.truncf %0 : vector<128x128xf32> to vector<128x128xbf16>
    %c0_1 = arith.constant 0 : index
    %c0_2 = arith.constant 0 : index
    %2 = vector.load %arg2[%c0_1, %c0_2] : memref<128x128xbf16, #tpu.memory_space<vmem>>, vector<128x128xbf16>
    %cst = arith.constant dense<0.000000e+00> : vector<128x128xf32>
    %3 = tpu.matmul %1, %2, %cst {dimension_numbers = #tpu.dot_dimension_numbers<[1], [0], [0], [1], [0, 0, 1, 1], [], []>} : vector<128x128xbf16>, vector<128x128xbf16>, vector<128x128xf32> -> vector<128x128xf32>
    %c0_3 = arith.constant 0 : index
    %c0_4 = arith.constant 0 : index
    %4 = vector.load %arg3[%c0_3, %c0_4] : memref<1x128xf32, #tpu.memory_space<vmem>>, vector<1x128xf32>
    %5 = vector.broadcast %4 : vector<1x128xf32> to vector<128x128xf32>
    %6 = arith.addf %3, %5 : vector<128x128xf32>
    %cst_5 = arith.constant 0.000000e+00 : f32
    %7 = vector.broadcast %cst_5 : f32 to vector<128x128xf32>
    %8 = arith.maximumf %6, %7 : vector<128x128xf32>
    %9 = arith.truncf %8 : vector<128x128xf32> to vector<128x128xbf16>
    %c0_6 = arith.constant 0 : index
    %c0_7 = arith.constant 0 : index
    %10 = vector.load %arg4[%c0_6, %c0_7] : memref<128x128xbf16, #tpu.memory_space<vmem>>, vector<128x128xbf16>
    %cst_8 = arith.constant dense<0.000000e+00> : vector<128x128xf32>
    %11 = tpu.matmul %9, %10, %cst_8 {dimension_numbers = #tpu.dot_dimension_numbers<[1], [0], [0], [1], [0, 0, 1, 1], [], []>} : vector<128x128xbf16>, vector<128x128xbf16>, vector<128x128xf32> -> vector<128x128xf32>
    %c0_9 = arith.constant 0 : index
    %c0_10 = arith.constant 0 : index
    %12 = vector.load %arg5[%c0_9, %c0_10] : memref<1x128xf32, #tpu.memory_space<vmem>>, vector<1x128xf32>
    %13 = vector.broadcast %12 : vector<1x128xf32> to vector<128x128xf32>
    %14 = arith.addf %11, %13 : vector<128x128xf32>
    %15 = vector.extract_strided_slice %14 {offsets = [0, 0], sizes = [128, 2], strides = [1, 1]} : vector<128x128xf32> to vector<128x2xf32>
    %c0_11 = arith.constant 0 : index
    %c0_12 = arith.constant 0 : index
    %16 = vector.load %arg6[%c0_11, %c0_12] : memref<128x2xf32, #tpu.memory_space<vmem>>, vector<128x2xf32>
    tpu.vector_store %arg6[%c0_11, %c0_12], %15 {strides = array<i32>} : memref<128x2xf32, #tpu.memory_space<vmem>>, vector<128x2xf32>,
    return
  }
  func.func @transform_0(%arg0: i32) -> (i32, i32) {
    %c0_i32 = arith.constant 0 : i32
    %c0_i32_0 = arith.constant 0 : i32
    return %arg0, %c0_i32 : i32, i32
  }
  func.func @transform_1(%arg0: i32) -> (i32, i32) {
    %c0_i32 = arith.constant 0 : i32
    %c0_i32_0 = arith.constant 0 : i32
    %c0_i32_1 = arith.constant 0 : i32
    return %c0_i32, %c0_i32_0 : i32, i32
  }
  func.func @transform_2(%arg0: i32) -> (i32, i32) {
    %c0_i32 = arith.constant 0 : i32
    %c0_i32_0 = arith.constant 0 : i32
    %c0_i32_1 = arith.constant 0 : i32
    return %c0_i32, %c0_i32_0 : i32, i32
  }
  func.func @transform_3(%arg0: i32) -> (i32, i32) {
    %c0_i32 = arith.constant 0 : i32
    %c0_i32_0 = arith.constant 0 : i32
    %c0_i32_1 = arith.constant 0 : i32
    return %c0_i32, %c0_i32_0 : i32, i32
  }
  func.func @transform_4(%arg0: i32) -> (i32, i32) {
    %c0_i32 = arith.constant 0 : i32
    %c0_i32_0 = arith.constant 0 : i32
    %c0_i32_1 = arith.constant 0 : i32
    return %c0_i32, %c0_i32_0 : i32, i32
  }
  func.func @transform_5(%arg0: i32) -> (i32, i32) {
    %c0_i32 = arith.constant 0 : i32
    %c0_i32_0 = arith.constant 0 : i32
    return %arg0, %c0_i32 : i32, i32
  }
}

</mosaic_0001>

<llo_original>
// kernel: decoder_forward.1
$region0: #{decoder_forward.1}
  #allocation0 [shape = 'u32[]', space=smem, size = 0x4, offset = 0x4, fixed_abs, tag = 'smem constant byte address 0x4 - core index']
  #allocation1 [shape = 'u32[144,128]{1,0:T(1,128)}', space=vmem, size = 0x12000, scoped, tag = 'internal scratch']
  %s0 = inlined_call_operand.vmem [shape: f32[200,128], index: 0, kind: input, shape index: {}]
  %s1 = inlined_call_operand.vmem [shape: bf16[128,128], index: 1, kind: input, shape index: {}]
  %s2 = inlined_call_operand.vmem [shape: f32[1,128], index: 2, kind: input, shape index: {}]
  %s3 = inlined_call_operand.vmem [shape: bf16[128,128], index: 3, kind: input, shape index: {}]
  %s4 = inlined_call_operand.vmem [shape: f32[1,128], index: 4, kind: input, shape index: {}]
  %s5 = inlined_call_operand.vmem [shape: f32[200,2], index: 5, kind: output, shape index: {}]
  %s6 = sld [smem:[#allocation0]]
  $region101: #{decoder_forward.1} parent=0
    _
  %s8 = ssub.s32 1, %s6
  %s9 = scalar_select 0, %s8, %s6
  $region1: #{decoder_forward.1} parent=0
    #allocation2 [shape = 'u8[131072]{0}', space=vmem, size = 0x20000, scoped, tag = 'output window, operand 0']
    loop: start=0, step=1, limit=4
    $region2: #{decoder_forward.1} parent=1 // loop_pre_header
      _
    $region3: #{decoder_forward.1} parent=1 // loop_header
      %s11 = sphi 0, %s15
      %p12 = scmp.ge.s32.totalorder %s11, 4
      %s21 = sphi 0, %s23
      %s24 = sphi 0, %s21
      %s25 = sphi 0, %s24
      %s41 = sphi 0, %s25
      %s45 = sphi 0, %s45
      %s47 = sphi 0, %s45
      %s48 = sphi 0, %s47
      %s62 = sphi 0, %s48
      %s66 = sphi 0, %s66
      %s68 = sphi 0, %s66
      %s69 = sphi 0, %s68
      %s83 = sphi 0, %s69
      %s87 = sphi 0, %s87
      %s89 = sphi 0, %s87
      %s90 = sphi 0, %s89
      %s104 = sphi 0, %s90
      %s108 = sphi 0, %s108
      %s110 = sphi 0, %s108
      %s111 = sphi 0, %s110
      %s125 = sphi 0, %s111
      %s131 = sphi 0, %s133
      %s134 = sphi 0, %s131
      %s135 = sphi 0, %s134
      %s151 = sphi 0, %s135
    $region4: #{decoder_forward.1} parent=1 // loop_header_branch
      %14 = sbr.rel (%p12) target = $region8
    $region5: #{decoder_forward.1} parent=1 // loop_body
      %s16 = ssub.s32 %s11, 1
      %s17 = ssub.s32 %s11, 2
      %s18 = sadd.s32 %s11, 1
      %s19 = ssub.s32 %s11, %s18
      %p20 = scmp.eq.s32.totalorder %s19, 0
      %s22 = sadd.s32 %s21, 1
      %s23 = scalar_select %p20, %s21, %s22
      %p26 = pneg %p20
      %p27 = scmp.eq.s32.totalorder %s11, 1
      %p28 = por %p26, %p27
      %p29 = scmp.ne.s32.totalorder %s21, %s24
      %p30 = scmp.eq.s32.totalorder %s11, 0
      %p31 = por %p29, %p30
      %p32 = scmp.ne.s32.totalorder %s21, %s24
      %p33 = scmp.eq.s32.totalorder %s16, 1
      %p34 = por %p32, %p33
      %p35 = scmp.ne.s32.totalorder %s24, %s25
      %p36 = scmp.eq.s32.totalorder %s16, 0
      %p37 = por %p35, %p36
      %p38 = scmp.ne.s32.totalorder %s24, %s25
      %p39 = scmp.eq.s32.totalorder %s17, 1
      %p40 = por %p38, %p39
      %p42 = scmp.ne.s32.totalorder %s25, %s41
      %p43 = scmp.eq.s32.totalorder %s17, 0
      %p44 = por %p42, %p43
      %s46 = sadd.s32 %s45, 1
      %p49 = scmp.eq.s32.totalorder %s11, 1
      %p50 = scmp.ne.s32.totalorder %s45, %s47
      %p51 = scmp.eq.s32.totalorder %s11, 0
      %p52 = por %p50, %p51
      %p53 = scmp.ne.s32.totalorder %s45, %s47
      %p54 = scmp.eq.s32.totalorder %s16, 1
      %p55 = por %p53, %p54
      %p56 = scmp.ne.s32.totalorder %s47, %s48
      %p57 = scmp.eq.s32.totalorder %s16, 0
      %p58 = por %p56, %p57
      %p59 = scmp.ne.s32.totalorder %s47, %s48
      %p60 = scmp.eq.s32.totalorder %s17, 1
      %p61 = por %p59, %p60
      %p63 = scmp.ne.s32.totalorder %s48, %s62
      %p64 = scmp.eq.s32.totalorder %s17, 0
      %p65 = por %p63, %p64
      %s67 = sadd.s32 %s66, 1
      %p70 = scmp.eq.s32.totalorder %s11, 1
      %p71 = scmp.ne.s32.totalorder %s66, %s68
      %p72 = scmp.eq.s32.totalorder %s11, 0
      %p73 = por %p71, %p72
      %p74 = scmp.ne.s32.totalorder %s66, %s68
      %p75 = scmp.eq.s32.totalorder %s16, 1
      %p76 = por %p74, %p75
      %p77 = scmp.ne.s32.totalorder %s68, %s69
      %p78 = scmp.eq.s32.totalorder %s16, 0
      %p79 = por %p77, %p78
      %p80 = scmp.ne.s32.totalorder %s68, %s69
      %p81 = scmp.eq.s32.totalorder %s17, 1
      %p82 = por %p80, %p81
      %p84 = scmp.ne.s32.totalorder %s69, %s83
      %p85 = scmp.eq.s32.totalorder %s17, 0
      %p86 = por %p84, %p85
      %s88 = sadd.s32 %s87, 1
      %p91 = scmp.eq.s32.totalorder %s11, 1
      %p92 = scmp.ne.s32.totalorder %s87, %s89
      %p93 = scmp.eq.s32.totalorder %s11, 0
      %p94 = por %p92, %p93
      %p95 = scmp.ne.s32.totalorder %s87, %s89
      %p96 = scmp.eq.s32.totalorder %s16, 1
      %p97 = por %p95, %p96
      %p98 = scmp.ne.s32.totalorder %s89, %s90
      %p99 = scmp.eq.s32.totalorder %s16, 0
      %p100 = por %p98, %p99
      %p101 = scmp.ne.s32.totalorder %s89, %s90
      %p102 = scmp.eq.s32.totalorder %s17, 1
      %p103 = por %p101, %p102
      %p105 = scmp.ne.s32.totalorder %s90, %s104
      %p106 = scmp.eq.s32.totalorder %s17, 0
      %p107 = por %p105, %p106
      %s109 = sadd.s32 %s108, 1
      %p112 = scmp.eq.s32.totalorder %s11, 1
      %p113 = scmp.ne.s32.totalorder %s108, %s110
      %p114 = scmp.eq.s32.totalorder %s11, 0
      %p115 = por %p113, %p114
      %p116 = scmp.ne.s32.totalorder %s108, %s110
      %p117 = scmp.eq.s32.totalorder %s16, 1
      %p118 = por %p116, %p117
      %p119 = scmp.ne.s32.totalorder %s110, %s111
      %p120 = scmp.eq.s32.totalorder %s16, 0
      %p121 = por %p119, %p120
      %p122 = scmp.ne.s32.totalorder %s110, %s111
      %p123 = scmp.eq.s32.totalorder %s17, 1
      %p124 = por %p122, %p123
      %p126 = scmp.ne.s32.totalorder %s111, %s125
      %p127 = scmp.eq.s32.totalorder %s17, 0
      %p128 = por %p126, %p127
      %s129 = ssub.s32 %s11, %s18
      %p130 = scmp.eq.s32.totalorder %s129, 0
      %s132 = sadd.s32 %s131, 1
      %s133 = scalar_select %p130, %s131, %s132
      %p136 = pneg %p130
      %p137 = scmp.eq.s32.totalorder %s11, 1
      %p138 = por %p136, %p137
      %p139 = scmp.ne.s32.totalorder %s131, %s134
      %p140 = scmp.eq.s32.totalorder %s11, 0
      %p141 = por %p139, %p140
      %p142 = scmp.ne.s32.totalorder %s131, %s134
      %p143 = scmp.eq.s32.totalorder %s16, 1
      %p144 = por %p142, %p143
      %p145 = scmp.ne.s32.totalorder %s134, %s135
      %p146 = scmp.eq.s32.totalorder %s16, 0
      %p147 = por %p145, %p146
      %p148 = scmp.ne.s32.totalorder %s134, %s135
      %p149 = scmp.eq.s32.totalorder %s17, 1
      %p150 = por %p148, %p149
      %p152 = scmp.ne.s32.totalorder %s135, %s151
      %p153 = scmp.eq.s32.totalorder %s17, 0
      %p154 = por %p152, %p153
      %p155 = scmp.le.s32.totalorder 1, %s11
      %p156 = scmp.lt.s32.totalorder %s11, 3
      %p157 = pnand %p155, %p156
      %p158 = pneg %p157
      // Predicated region
      $region9: #{decoder_forward.1} parent=5 // pred_check
        _
      $region10: #{decoder_forward.1} parent=5 // pred_check_branch
        %160 = sbr.rel (%p157) target = $region12
      $region11: #{decoder_forward.1} parent=5 // pred_region
        %s161 = ssub.s32 %s11, 1
        // Predicated region
        $region13: #{decoder_forward.1} parent=11 // pred_check
          %p162 = pneg %p58
        $region14: #{decoder_forward.1} parent=11 // pred_check_branch
          %164 = sbr.rel (%p162) target = $region16
        $region15: #{decoder_forward.1} parent=11 // pred_region
          _
        $region16: #{decoder_forward.1} parent=11 // pred_fallthru
          _
        // Predicated region
        $region17: #{decoder_forward.1} parent=11 // pred_check
          %p165 = pneg %p79
        $region18: #{decoder_forward.1} parent=11 // pred_check_branch
          %167 = sbr.rel (%p165) target = $region20
        $region19: #{decoder_forward.1} parent=11 // pred_region
          _
        $region20: #{decoder_forward.1} parent=11 // pred_fallthru
          _
        // Predicated region
        $region21: #{decoder_forward.1} parent=11 // pred_check
          %p168 = pneg %p100
        $region22: #{decoder_forward.1} parent=11 // pred_check_branch
          %170 = sbr.rel (%p168) target = $region24
        $region23: #{decoder_forward.1} parent=11 // pred_region
          _
        $region24: #{decoder_forward.1} parent=11 // pred_fallthru
          _
        // Predicated region
        $region25: #{decoder_forward.1} parent=11 // pred_check
          %p171 = pneg %p121
        $region26: #{decoder_forward.1} parent=11 // pred_check_branch
          %173 = sbr.rel (%p171) target = $region28
        $region27: #{decoder_forward.1} parent=11 // pred_region
          _
        $region28: #{decoder_forward.1} parent=11 // pred_fallthru
          _
      $region12: #{decoder_forward.1} parent=5 // pred_fallthru
        _
      %p174 = scmp.lt.s32.totalorder %s11, 2
      // Predicated region
      $region29: #{decoder_forward.1} parent=5 // pred_check
        %p175 = pneg %p174
      $region30: #{decoder_forward.1} parent=5 // pred_check_branch
        %177 = sbr.rel (%p175) target = $region32
      $region31: #{decoder_forward.1} parent=5 // pred_region
        // Predicated region
        $region33: #{decoder_forward.1} parent=31 // pred_check
          %p178 = pneg %p31
        $region34: #{decoder_forward.1} parent=31 // pred_check_branch
          %180 = sbr.rel (%p178) target = $region36
        $region35: #{decoder_forward.1} parent=31 // pred_region
          %s181 = smul.u32 16, %s11
          %s182 = ssub.s32 25, %s181
          %p183 = scmp.lt.s32.totalorder %s182, 16
          %s184 = scalar_select %p183, %s182, 16
          %s185 = smul.u32 128, %s184
          %p186 = scmp.lt.s32.totalorder %s181, 24
          %s187 = scalar_select %p186, %s181, 24
          %s188 = smul.addr %s187, 8
          %s189 = scalar_lea.vmem %s0, %s188
          %s190 = smul.u32 16, %s11
          %s191 = ssub.s32 25, %s190
          %p192 = scmp.lt.s32.totalorder %s191, 16
          %s193 = scalar_select %p192, %s191, 16
          %s194 = smul.u32 128, %s193
        $region36: #{decoder_forward.1} parent=31 // pred_fallthru
          _
      $region32: #{decoder_forward.1} parent=5 // pred_fallthru
        _
      %p195 = scmp.le.s32.totalorder 1, %s11
      %p196 = scmp.lt.s32.totalorder %s11, 3
      %p197 = pnand %p195, %p196
      %p198 = pneg %p197
      // Predicated region
      $region37: #{decoder_forward.1} parent=5 // pred_check
        _
      $region38: #{decoder_forward.1} parent=5 // pred_check_branch
        %200 = sbr.rel (%p197) target = $region40
      $region39: #{decoder_forward.1} parent=5 // pred_region
        %s201 = ssub.s32 %s11, 1
        %s202 = smul.u32 16, %s16
        %s203 = ssub.s32 25, %s202
        %p204 = scmp.lt.s32.totalorder %s203, 16
        %s205 = scalar_select %p204, %s203, 16
        %s206 = smul.u32 128, %s205
        %p207 = scmp.lt.s32.totalorder %s202, 24
        %s208 = scalar_select %p207, %s202, 24
        %s209 = smul.addr %s208, 8
        %s210 = scalar_lea.vmem %s0, %s209
        %p211 = pneg %p37
        %p212 = pneg %p34
        %p213 = pneg %p58
        %p214 = pneg %p55
        %p215 = pneg %p79
        %p216 = pneg %p76
        %p217 = pneg %p100
        %p218 = pneg %p97
        %p219 = pneg %p121
        %p220 = pneg %p118
        %p221 = pneg %p147
        %p222 = pneg %p144
        %s223 = sand.u32 %s134, 1
        %s224 = sand.u32 %s134, 1
        %s225 = smul.addr %s224, 128
        %s226 = scalar_lea.vmem [#allocation2], %s225
        %s227 = smul.u32 16, %s16
        %s228 = ssub.s32 25, %s227
        %p229 = scmp.lt.s32.totalorder %s228, 16
        %s230 = scalar_select %p229, %s228, 16
        %s231 = smul.u32 128, %s230
        %p232 = scmp.lt.s32.totalorder %s227, 24
        %s233 = scalar_select %p232, %s227, 24
        %s234 = smul.addr %s233, 8
        %s235 = scalar_lea.vmem %s0, %s234
        %s236 = smul.u32 16, %s16
        %s237 = ssub.s32 25, %s236
        %p238 = scmp.lt.s32.totalorder %s237, 16
        %s239 = scalar_select %p238, %s237, 16
        %s240 = smul.u32 128, %s239
        %s241 = smul.u32 16, %s16
        %s242 = ssub.s32 25, %s241
        %p243 = scmp.lt.s32.totalorder %s242, 16
        %s244 = scalar_select %p243, %s242, 16
        %s245 = smul.u32 128, %s244
        %v247 = vld [vmem:[%s235] sm:$0xff]
        %v248 = vld [vmem:[%s235 + $0x8] sm:$0xff]
        %v249 = vld [vmem:[%s235 + $0x10] sm:$0xff]
        %v250 = vld [vmem:[%s235 + $0x18] sm:$0xff]
        %v251 = vld [vmem:[%s235 + $0x20] sm:$0xff]
        %v252 = vld [vmem:[%s235 + $0x28] sm:$0xff]
        %v253 = vld [vmem:[%s235 + $0x30] sm:$0xff]
        %v254 = vld [vmem:[%s235 + $0x38] sm:$0xff]
        %v255 = vld [vmem:[%s235 + $0x40] sm:$0xff]
        %v256 = vld [vmem:[%s235 + $0x48] sm:$0xff]
        %v257 = vld [vmem:[%s235 + $0x50] sm:$0xff]
        %v258 = vld [vmem:[%s235 + $0x58] sm:$0xff]
        %v259 = vld [vmem:[%s235 + $0x60] sm:$0xff]
        %v260 = vld [vmem:[%s235 + $0x68] sm:$0xff]
        %v261 = vld [vmem:[%s235 + $0x70] sm:$0xff]
        %v262 = vld [vmem:[%s235 + $0x78] sm:$0xff]
        %v263 = vpack.c.bf16 %v248, %v247
        %v264 = vpack.c.bf16 %v250, %v249
        %v265 = vpack.c.bf16 %v252, %v251
        %v266 = vpack.c.bf16 %v254, %v253
        %v267 = vpack.c.bf16 %v256, %v255
        %v268 = vpack.c.bf16 %v258, %v257
        %v269 = vpack.c.bf16 %v260, %v259
        %v270 = vpack.c.bf16 %v262, %v261
        %v271 = vld [vmem:[%s1] sm:$0xf]
        %v272 = vld [vmem:[%s1 + $0x4] sm:$0xf]
        %v273 = vld [vmem:[%s1 + $0x8] sm:$0xf]
        %v274 = vld [vmem:[%s1 + $0xc] sm:$0xf]
        %v275 = vld [vmem:[%s1 + $0x10] sm:$0xf]
        %v276 = vld [vmem:[%s1 + $0x14] sm:$0xf]
        %v277 = vld [vmem:[%s1 + $0x18] sm:$0xf]
        %v278 = vld [vmem:[%s1 + $0x1c] sm:$0xf]
        %v279 = vld [vmem:[%s1 + $0x20] sm:$0xf]
        %v280 = vld [vmem:[%s1 + $0x24] sm:$0xf]
        %v281 = vld [vmem:[%s1 + $0x28] sm:$0xf]
        %v282 = vld [vmem:[%s1 + $0x2c] sm:$0xf]
        %v283 = vld [vmem:[%s1 + $0x30] sm:$0xf]
        %v284 = vld [vmem:[%s1 + $0x34] sm:$0xf]
        %v285 = vld [vmem:[%s1 + $0x38] sm:$0xf]
        %v286 = vld [vmem:[%s1 + $0x3c] sm:$0xf]
        %v287 = vld [vmem:[%s2] sm:$0x1]
        %v289 = vlaneseq
        %v290 = vshrl.u32 %v289, 7
        %v291 = vsub.s32 0, %v290
        %v292 = vrot.slane %v287, %v291
        %v310 = vunpack.c.l.b16 %v271
        %v311 = vunpack.c.l.b16 %v272
        %v312 = vunpack.c.l.b16 %v273
        %v313 = vunpack.c.l.b16 %v274
        %v314 = vunpack.c.l.b16 %v275
        %v315 = vunpack.c.l.b16 %v276
        %v316 = vunpack.c.l.b16 %v277
        %v317 = vunpack.c.l.b16 %v278
        %v318 = vunpack.c.l.b16 %v279
        %v319 = vunpack.c.l.b16 %v280
        %v320 = vunpack.c.l.b16 %v281
        %v321 = vunpack.c.l.b16 %v282
        %v322 = vunpack.c.l.b16 %v283
        %v323 = vunpack.c.l.b16 %v284
        %v324 = vunpack.c.l.b16 %v285
        %v325 = vunpack.c.l.b16 %v286
        %v326 = vpack.c.b16 %v311, %v310
        %v327 = vpack.c.b16 %v313, %v312
        %v328 = vpack.c.b16 %v315, %v314
        %v329 = vpack.c.b16 %v317, %v316
        %v330 = vpack.c.b16 %v319, %v318
        %v331 = vpack.c.b16 %v321, %v320
        %v332 = vpack.c.b16 %v323, %v322
        %v333 = vpack.c.b16 %v325, %v324
        %342 = vmatprep.subr.bf16.mxu0 0
        %343 = vmatpush1.bf16.msra.mxu0 %v326
        %344 = vmatprep.subr.bf16.mxu0 0
        %345 = vmatpush1.bf16.msra.mxu0 %v327
        %346 = vmatprep.subr.bf16.mxu0 0
        %347 = vmatpush1.bf16.msra.mxu0 %v328
        %348 = vmatprep.subr.bf16.mxu0 0
        %349 = vmatpush1.bf16.msra.mxu0 %v329
        %350 = vmatprep.subr.bf16.mxu0 0
        %351 = vmatpush1.bf16.msra.mxu0 %v330
        %352 = vmatprep.subr.bf16.mxu0 0
        %353 = vmatpush1.bf16.msra.mxu0 %v331
        %354 = vmatprep.subr.bf16.mxu0 0
        %355 = vmatpush1.bf16.msra.mxu0 %v332
        %356 = vmatprep.subr.bf16.mxu0 0
        %357 = vmatpush1.bf16.msra.mxu0 %v333
        %358 = vmatprep.subr.bf16.mxu0 0
        %359 = vmatpush1.bf16.msra.mxu0 0
        %360 = vmatprep.subr.bf16.mxu0 0
        %361 = vmatpush1.bf16.msra.mxu0 0
        %362 = vmatprep.subr.bf16.mxu0 0
        %363 = vmatpush1.bf16.msra.mxu0 0
        %364 = vmatprep.subr.bf16.mxu0 0
        %365 = vmatpush1.bf16.msra.mxu0 0
        %366 = vmatprep.subr.bf16.mxu0 0
        %367 = vmatpush1.bf16.msra.mxu0 0
        %368 = vmatprep.subr.bf16.mxu0 0
        %369 = vmatpush1.bf16.msra.mxu0 0
        %370 = vmatprep.subr.bf16.mxu0 0
        %371 = vmatpush1.bf16.msra.mxu0 0
        %372 = vmatprep.subr.bf16.mxu0 0
        %373 = vmatpush1.bf16.msra.mxu0 0
        %374 = vmatprep.mubr.bf16.mxu0 0
        %375 = vmatmul.mubr.bf16.gmra.mrb[0].mxu0 %v263
        %v376 = vpop.f32.mrb[0].mxu0
        %v377 = vadd.f32 %v292, %v376
        %v378 = vpop.f32.mrb[0].mxu0
        %v379 = vpop.f32.mrb[0].mxu0
        %v380 = vadd.f32 %v292, %v379
        %v381 = vpop.f32.mrb[0].mxu0
        %382 = vmatprep.mubr.bf16.mxu0 0
        %383 = vmatmul.mubr.bf16.gmra.mrb[0].mxu0 %v264
        %v384 = vpop.f32.mrb[0].mxu0
        %v385 = vadd.f32 %v292, %v384
        %v386 = vpop.f32.mrb[0].mxu0
        %v387 = vpop.f32.mrb[0].mxu0
        %v388 = vadd.f32 %v292, %v387
        %v389 = vpop.f32.mrb[0].mxu0
        %390 = vmatprep.mubr.bf16.mxu0 0
        %391 = vmatmul.mubr.bf16.gmra.mrb[0].mxu0 %v265
        %v392 = vpop.f32.mrb[0].mxu0
        %v393 = vadd.f32 %v292, %v392
        %v394 = vpop.f32.mrb[0].mxu0
        %v395 = vpop.f32.mrb[0].mxu0
        %v396 = vadd.f32 %v292, %v395
        %v397 = vpop.f32.mrb[0].mxu0
        %398 = vmatprep.mubr.bf16.mxu0 0
        %399 = vmatmul.mubr.bf16.gmra.mrb[0].mxu0 %v266
        %v400 = vpop.f32.mrb[0].mxu0
        %v401 = vadd.f32 %v292, %v400
        %v402 = vpop.f32.mrb[0].mxu0
        %v403 = vpop.f32.mrb[0].mxu0
        %v404 = vadd.f32 %v292, %v403
        %v405 = vpop.f32.mrb[0].mxu0
        %406 = vmatprep.mubr.bf16.mxu0 0
        %407 = vmatmul.mubr.bf16.gmra.mrb[0].mxu0 %v267
        %v408 = vpop.f32.mrb[0].mxu0
        %v409 = vadd.f32 %v292, %v408
        %v410 = vpop.f32.mrb[0].mxu0
        %v411 = vpop.f32.mrb[0].mxu0
        %v412 = vadd.f32 %v292, %v411
        %v413 = vpop.f32.mrb[0].mxu0
        %414 = vmatprep.mubr.bf16.mxu0 0
        %415 = vmatmul.mubr.bf16.gmra.mrb[0].mxu0 %v268
        %v416 = vpop.f32.mrb[0].mxu0
        %v417 = vadd.f32 %v292, %v416
        %v418 = vpop.f32.mrb[0].mxu0
        %v419 = vpop.f32.mrb[0].mxu0
        %v420 = vadd.f32 %v292, %v419
        %v421 = vpop.f32.mrb[0].mxu0
        %422 = vmatprep.mubr.bf16.mxu0 0
        %423 = vmatmul.mubr.bf16.gmra.mrb[0].mxu0 %v269
        %v424 = vpop.f32.mrb[0].mxu0
        %v425 = vadd.f32 %v292, %v424
        %v426 = vpop.f32.mrb[0].mxu0
        %v427 = vpop.f32.mrb[0].mxu0
        %v428 = vadd.f32 %v292, %v427
        %v429 = vpop.f32.mrb[0].mxu0
        %430 = vmatprep.mubr.bf16.mxu0 0
        %431 = vmatmul.mubr.bf16.gmra.mrb[0].mxu0 %v270
        %v432 = vpop.f32.mrb[0].mxu0
        %v433 = vadd.f32 %v292, %v432
        %v434 = vpop.f32.mrb[0].mxu0
        %v435 = vpop.f32.mrb[0].mxu0
        %v436 = vadd.f32 %v292, %v435
        %v437 = vpop.f32.mrb[0].mxu0
        %438 = vdwg.mxu0
        %v439 = vmax.f32 %v377, 0.0
        %v440 = vmax.f32 %v380, 0.0
        %v441 = vmax.f32 %v385, 0.0
        %v442 = vmax.f32 %v388, 0.0
        %v443 = vmax.f32 %v393, 0.0
        %v444 = vmax.f32 %v396, 0.0
        %v445 = vmax.f32 %v401, 0.0
        %v446 = vmax.f32 %v404, 0.0
        %v447 = vmax.f32 %v409, 0.0
        %v448 = vmax.f32 %v412, 0.0
        %v449 = vmax.f32 %v417, 0.0
        %v450 = vmax.f32 %v420, 0.0
        %v451 = vmax.f32 %v425, 0.0
        %v452 = vmax.f32 %v428, 0.0
        %v453 = vmax.f32 %v433, 0.0
        %v454 = vmax.f32 %v436, 0.0
        %v455 = vpack.c.bf16 %v440, %v439
        %v456 = vpack.c.bf16 %v442, %v441
        %v457 = vpack.c.bf16 %v444, %v443
        %v458 = vpack.c.bf16 %v446, %v445
        %v459 = vpack.c.bf16 %v448, %v447
        %v460 = vpack.c.bf16 %v450, %v449
        %v461 = vpack.c.bf16 %v452, %v451
        %v462 = vpack.c.bf16 %v454, %v453
        %v463 = vld [vmem:[%s3] sm:$0xf]
        %v464 = vld [vmem:[%s3 + $0x4] sm:$0xf]
        %v465 = vld [vmem:[%s3 + $0x8] sm:$0xf]
        %v466 = vld [vmem:[%s3 + $0xc] sm:$0xf]
        %v467 = vld [vmem:[%s3 + $0x10] sm:$0xf]
        %v468 = vld [vmem:[%s3 + $0x14] sm:$0xf]
        %v469 = vld [vmem:[%s3 + $0x18] sm:$0xf]
        %v470 = vld [vmem:[%s3 + $0x1c] sm:$0xf]
        %v471 = vld [vmem:[%s3 + $0x20] sm:$0xf]
        %v472 = vld [vmem:[%s3 + $0x24] sm:$0xf]
        %v473 = vld [vmem:[%s3 + $0x28] sm:$0xf]
        %v474 = vld [vmem:[%s3 + $0x2c] sm:$0xf]
        %v475 = vld [vmem:[%s3 + $0x30] sm:$0xf]
        %v476 = vld [vmem:[%s3 + $0x34] sm:$0xf]
        %v477 = vld [vmem:[%s3 + $0x38] sm:$0xf]
        %v478 = vld [vmem:[%s3 + $0x3c] sm:$0xf]
        %v479 = vld [vmem:[%s4] sm:$0x1]
        %v481 = vlaneseq
        %v482 = vshrl.u32 %v481, 7
        %v483 = vsub.s32 0, %v482
        %v484 = vrot.slane %v479, %v483
        %v502 = vunpack.c.l.b16 %v463
        %v503 = vunpack.c.l.b16 %v464
        %v504 = vunpack.c.l.b16 %v465
        %v505 = vunpack.c.l.b16 %v466
        %v506 = vunpack.c.l.b16 %v467
        %v507 = vunpack.c.l.b16 %v468
        %v508 = vunpack.c.l.b16 %v469
        %v509 = vunpack.c.l.b16 %v470
        %v510 = vunpack.c.l.b16 %v471
        %v511 = vunpack.c.l.b16 %v472
        %v512 = vunpack.c.l.b16 %v473
        %v513 = vunpack.c.l.b16 %v474
        %v514 = vunpack.c.l.b16 %v475
        %v515 = vunpack.c.l.b16 %v476
        %v516 = vunpack.c.l.b16 %v477
        %v517 = vunpack.c.l.b16 %v478
        %v518 = vpack.c.b16 %v503, %v502
        %v519 = vpack.c.b16 %v505, %v504
        %v520 = vpack.c.b16 %v507, %v506
        %v521 = vpack.c.b16 %v509, %v508
        %v522 = vpack.c.b16 %v511, %v510
        %v523 = vpack.c.b16 %v513, %v512
        %v524 = vpack.c.b16 %v515, %v514
        %v525 = vpack.c.b16 %v517, %v516
        %534 = vmatprep.subr.bf16.mxu0 0
        %535 = vmatpush1.bf16.msra.mxu0 %v518
        %536 = vmatprep.subr.bf16.mxu0 0
        %537 = vmatpush1.bf16.msra.mxu0 %v519
        %538 = vmatprep.subr.bf16.mxu0 0
        %539 = vmatpush1.bf16.msra.mxu0 %v520
        %540 = vmatprep.subr.bf16.mxu0 0
        %541 = vmatpush1.bf16.msra.mxu0 %v521
        %542 = vmatprep.subr.bf16.mxu0 0
        %543 = vmatpush1.bf16.msra.mxu0 %v522
        %544 = vmatprep.subr.bf16.mxu0 0
        %545 = vmatpush1.bf16.msra.mxu0 %v523
        %546 = vmatprep.subr.bf16.mxu0 0
        %547 = vmatpush1.bf16.msra.mxu0 %v524
        %548 = vmatprep.subr.bf16.mxu0 0
        %549 = vmatpush1.bf16.msra.mxu0 %v525
        %550 = vmatprep.subr.bf16.mxu0 0
        %551 = vmatpush1.bf16.msra.mxu0 0
        %552 = vmatprep.subr.bf16.mxu0 0
        %553 = vmatpush1.bf16.msra.mxu0 0
        %554 = vmatprep.subr.bf16.mxu0 0
        %555 = vmatpush1.bf16.msra.mxu0 0
        %556 = vmatprep.subr.bf16.mxu0 0
        %557 = vmatpush1.bf16.msra.mxu0 0
        %558 = vmatprep.subr.bf16.mxu0 0
        %559 = vmatpush1.bf16.msra.mxu0 0
        %560 = vmatprep.subr.bf16.mxu0 0
        %561 = vmatpush1.bf16.msra.mxu0 0
        %562 = vmatprep.subr.bf16.mxu0 0
        %563 = vmatpush1.bf16.msra.mxu0 0
        %564 = vmatprep.subr.bf16.mxu0 0
        %565 = vmatpush1.bf16.msra.mxu0 0
        %566 = vmatprep.mubr.bf16.mxu0 0
        %567 = vmatmul.mubr.bf16.gmra.mrb[0].mxu0 %v455
        %v568 = vpop.f32.mrb[0].mxu0
        %v569 = vadd.f32 %v484, %v568
        %v570 = vpop.f32.mrb[0].mxu0
        %v571 = vpop.f32.mrb[0].mxu0
        %v572 = vadd.f32 %v484, %v571
        %v573 = vpop.f32.mrb[0].mxu0
        %574 = vmatprep.mubr.bf16.mxu0 0
        %575 = vmatmul.mubr.bf16.gmra.mrb[0].mxu0 %v456
        %v576 = vpop.f32.mrb[0].mxu0
        %v577 = vadd.f32 %v484, %v576
        %v578 = vpop.f32.mrb[0].mxu0
        %v579 = vpop.f32.mrb[0].mxu0
        %v580 = vadd.f32 %v484, %v579
        %v581 = vpop.f32.mrb[0].mxu0
        %582 = vmatprep.mubr.bf16.mxu0 0
        %583 = vmatmul.mubr.bf16.gmra.mrb[0].mxu0 %v457
        %v584 = vpop.f32.mrb[0].mxu0
        %v585 = vadd.f32 %v484, %v584
        %v586 = vpop.f32.mrb[0].mxu0
        %v587 = vpop.f32.mrb[0].mxu0
        %v588 = vadd.f32 %v484, %v587
        %v589 = vpop.f32.mrb[0].mxu0
        %590 = vmatprep.mubr.bf16.mxu0 0
        %591 = vmatmul.mubr.bf16.gmra.mrb[0].mxu0 %v458
        %v592 = vpop.f32.mrb[0].mxu0
        %v593 = vadd.f32 %v484, %v592
        %v594 = vpop.f32.mrb[0].mxu0
        %v595 = vpop.f32.mrb[0].mxu0
        %v596 = vadd.f32 %v484, %v595
        %v597 = vpop.f32.mrb[0].mxu0
        %598 = vmatprep.mubr.bf16.mxu0 0
        %599 = vmatmul.mubr.bf16.gmra.mrb[0].mxu0 %v459
        %v600 = vpop.f32.mrb[0].mxu0
        %v601 = vadd.f32 %v484, %v600
        %v602 = vpop.f32.mrb[0].mxu0
        %v603 = vpop.f32.mrb[0].mxu0
        %v604 = vadd.f32 %v484, %v603
        %v605 = vpop.f32.mrb[0].mxu0
        %606 = vmatprep.mubr.bf16.mxu0 0
        %607 = vmatmul.mubr.bf16.gmra.mrb[0].mxu0 %v460
        %v608 = vpop.f32.mrb[0].mxu0
        %v609 = vadd.f32 %v484, %v608
        %v610 = vpop.f32.mrb[0].mxu0
        %v611 = vpop.f32.mrb[0].mxu0
        %v612 = vadd.f32 %v484, %v611
        %v613 = vpop.f32.mrb[0].mxu0
        %614 = vmatprep.mubr.bf16.mxu0 0
        %615 = vmatmul.mubr.bf16.gmra.mrb[0].mxu0 %v461
        %v616 = vpop.f32.mrb[0].mxu0
        %v617 = vadd.f32 %v484, %v616
        %v618 = vpop.f32.mrb[0].mxu0
        %v619 = vpop.f32.mrb[0].mxu0
        %v620 = vadd.f32 %v484, %v619
        %v621 = vpop.f32.mrb[0].mxu0
        %622 = vmatprep.mubr.bf16.mxu0 0
        %623 = vmatmul.mubr.bf16.gmra.mrb[0].mxu0 %v462
        %v624 = vpop.f32.mrb[0].mxu0
        %v625 = vadd.f32 %v484, %v624
        %v626 = vpop.f32.mrb[0].mxu0
        %v627 = vpop.f32.mrb[0].mxu0
        %v628 = vadd.f32 %v484, %v627
        %v629 = vpop.f32.mrb[0].mxu0
        %630 = vdwg.mxu0
        %vm631 = vcmask 15360
        %632 = vst.msk [vmem:[%s226] sm:$0xff] %vm631, %v569
        %633 = vst.msk [vmem:[%s226 + $0x8] sm:$0xff] %vm631, %v572
        %634 = vst.msk [vmem:[%s226 + $0x10] sm:$0xff] %vm631, %v577
        %635 = vst.msk [vmem:[%s226 + $0x18] sm:$0xff] %vm631, %v580
        %636 = vst.msk [vmem:[%s226 + $0x20] sm:$0xff] %vm631, %v585
        %637 = vst.msk [vmem:[%s226 + $0x28] sm:$0xff] %vm631, %v588
        %638 = vst.msk [vmem:[%s226 + $0x30] sm:$0xff] %vm631, %v593
        %639 = vst.msk [vmem:[%s226 + $0x38] sm:$0xff] %vm631, %v596
        %640 = vst.msk [vmem:[%s226 + $0x40] sm:$0xff] %vm631, %v601
        %641 = vst.msk [vmem:[%s226 + $0x48] sm:$0xff] %vm631, %v604
        %642 = vst.msk [vmem:[%s226 + $0x50] sm:$0xff] %vm631, %v609
        %643 = vst.msk [vmem:[%s226 + $0x58] sm:$0xff] %vm631, %v612
        %644 = vst.msk [vmem:[%s226 + $0x60] sm:$0xff] %vm631, %v617
        %645 = vst.msk [vmem:[%s226 + $0x68] sm:$0xff] %vm631, %v620
        %646 = vst.msk [vmem:[%s226 + $0x70] sm:$0xff] %vm631, %v625
        %647 = vst.msk [vmem:[%s226 + $0x78] sm:$0xff] %vm631, %v628
        %s648 = sand.u32 %s134, 1
        %s649 = sand.u32 %s134, 1
        %s650 = smul.addr %s649, 128
        %s651 = scalar_lea.vmem [#allocation2], %s650
        // Predicated region
        $region41: #{decoder_forward.1} parent=39 // pred_check
          %p652 = pneg %p144
        $region42: #{decoder_forward.1} parent=39 // pred_check_branch
          %654 = sbr.rel (%p652) target = $region44
        $region43: #{decoder_forward.1} parent=39 // pred_region
          %s655 = smul.u32 16, %s16
          %s656 = ssub.s32 25, %s655
          %p657 = scmp.lt.s32.totalorder %s656, 16
          %s658 = scalar_select %p657, %s656, 16
          %s659 = smul.u32 128, %s658
          %p660 = scmp.ne.s32.totalorder 0, %s659
          %s661 = smul.addr %s655, 8
          %s662 = scalar_lea.vmem %s5, %s661
          // Predicated region
          $region45: #{decoder_forward.1} parent=43 // pred_check
            %p663 = pneg %p660
          $region46: #{decoder_forward.1} parent=43 // pred_check_branch
            %665 = sbr.rel (%p663) target = $region48
          $region47: #{decoder_forward.1} parent=43 // pred_region
            // Predicated region
            $region49: #{decoder_forward.1} parent=47 // pred_check
              _
            $region50: #{decoder_forward.1} parent=47 // pred_check_branch
              %667 = sbr.rel (0) target = $region52
            $region51: #{decoder_forward.1} parent=47 // pred_region
              // Predicated region
              $region71: #{decoder_forward.1} parent=51 // pred_check
                _
              $region72: #{decoder_forward.1} parent=51 // pred_check_branch
                %746 = sbr.rel (0) target = $region74
              $region73: #{decoder_forward.1} parent=51 // pred_region
                %s747 = sshrl.u32 %s658, 4
                // While loop
                $region75: #{decoder_forward.1} parent=73 // loop_pre_header
                  _
                $region76: #{decoder_forward.1} parent=73 // loop_header
                  %s749 = sphi 0, %s751
                  %p750 = scmp.ge.s32.totalorder %s749, %s747
                  %s754 = sphi 0, %s791
                  %s755 = sphi %s651, %s794
                  %s756 = sphi %s662, %s795
                $region77: #{decoder_forward.1} parent=73 // loop_header_branch
                  %753 = sbr.rel (%p750) target = $region81
                $region78: #{decoder_forward.1} parent=73 // loop_body
                  %v757 = vld [vmem:[%s755] sm:$0xff]
                  %758 = vst [vmem:[%s756] sm:$0xff] %v757
                  %v759 = vld [vmem:[%s755 + $0x8] sm:$0xff]
                  %760 = vst [vmem:[%s756 + $0x8] sm:$0xff] %v759
                  %v761 = vld [vmem:[%s755 + $0x10] sm:$0xff]
                  %762 = vst [vmem:[%s756 + $0x10] sm:$0xff] %v761
                  %v763 = vld [vmem:[%s755 + $0x18] sm:$0xff]
                  %764 = vst [vmem:[%s756 + $0x18] sm:$0xff] %v763
                  %v765 = vld [vmem:[%s755 + $0x20] sm:$0xff]
                  %766 = vst [vmem:[%s756 + $0x20] sm:$0xff] %v765
                  %v767 = vld [vmem:[%s755 + $0x28] sm:$0xff]
                  %768 = vst [vmem:[%s756 + $0x28] sm:$0xff] %v767
                  %v769 = vld [vmem:[%s755 + $0x30] sm:$0xff]
                  %770 = vst [vmem:[%s756 + $0x30] sm:$0xff] %v769
                  %v771 = vld [vmem:[%s755 + $0x38] sm:$0xff]
                  %772 = vst [vmem:[%s756 + $0x38] sm:$0xff] %v771
                  %v773 = vld [vmem:[%s755 + $0x40] sm:$0xff]
                  %774 = vst [vmem:[%s756 + $0x40] sm:$0xff] %v773
                  %v775 = vld [vmem:[%s755 + $0x48] sm:$0xff]
                  %776 = vst [vmem:[%s756 + $0x48] sm:$0xff] %v775
                  %v777 = vld [vmem:[%s755 + $0x50] sm:$0xff]
                  %778 = vst [vmem:[%s756 + $0x50] sm:$0xff] %v777
                  %v779 = vld [vmem:[%s755 + $0x58] sm:$0xff]
                  %780 = vst [vmem:[%s756 + $0x58] sm:$0xff] %v779
                  %v781 = vld [vmem:[%s755 + $0x60] sm:$0xff]
                  %782 = vst [vmem:[%s756 + $0x60] sm:$0xff] %v781
                  %v783 = vld [vmem:[%s755 + $0x68] sm:$0xff]
                  %784 = vst [vmem:[%s756 + $0x68] sm:$0xff] %v783
                  %v785 = vld [vmem:[%s755 + $0x70] sm:$0xff]
                  %786 = vst [vmem:[%s756 + $0x70] sm:$0xff] %v785
                  %v787 = vld [vmem:[%s755 + $0x78] sm:$0xff]
                  %788 = vst [vmem:[%s756 + $0x78] sm:$0xff] %v787
                  %s789 = sadd.s32 1, %s754
                  %p790 = scmp.ge.s32.totalorder %s789, %s747
                  %s791 = scalar_select %p790, 0, %s789
                  %s792 = smul.u32 %s791, 128
                  %s793 = smul.u32 %s791, 128
                  %s794 = scalar_lea.vmem %s651, %s792 [#allocation2]
                  %s795 = scalar_lea.vmem %s662, %s793
                $region79: #{decoder_forward.1} parent=73 // loop_footer
                  %s751 = sadd.s32 %s749, 1
                $region80: #{decoder_forward.1} parent=73 // loop_footer_branch
                  %748 = sbr.rel target = $region76
                $region81: #{decoder_forward.1} parent=73 // loop_exit
                  _
                %s796 = sshrl.u32 %s658, 4
                %s797 = sand.u32 %s658, 15
                %s798 = smul.u32 %s796, 16
                %s799 = smul.u32 8, %s798
                %s800 = scalar_lea.vmem %s651, %s799 [#allocation2]
                %s801 = smul.u32 8, %s798
                %s802 = scalar_lea.vmem %s662, %s801
                // While loop
                $region82: #{decoder_forward.1} parent=73 // loop_pre_header
                  _
                $region83: #{decoder_forward.1} parent=73 // loop_header
                  %s804 = sphi 0, %s806
                  %p805 = scmp.ge.s32.totalorder %s804, %s797
                  %s809 = sphi 0, %s816
                  %s810 = sphi %s800, %s819
                  %s811 = sphi %s802, %s820
                $region84: #{decoder_forward.1} parent=73 // loop_header_branch
                  %808 = sbr.rel (%p805) target = $region88
                $region85: #{decoder_forward.1} parent=73 // loop_body
                  %v812 = vld [vmem:[%s810] sm:$0xff]
                  %813 = vst [vmem:[%s811] sm:$0xff] %v812
                  %s814 = sadd.s32 1, %s809
                  %p815 = scmp.ge.s32.totalorder %s814, %s797
                  %s816 = scalar_select %p815, 0, %s814
                  %s817 = smul.u32 %s816, 8
                  %s818 = smul.u32 %s816, 8
                  %s819 = scalar_lea.vmem %s800, %s817 [#allocation2]
                  %s820 = scalar_lea.vmem %s802, %s818
                $region86: #{decoder_forward.1} parent=73 // loop_footer
                  %s806 = sadd.s32 %s804, 1
                $region87: #{decoder_forward.1} parent=73 // loop_footer_branch
                  %803 = sbr.rel target = $region83
                $region88: #{decoder_forward.1} parent=73 // loop_exit
                  _
              $region74: #{decoder_forward.1} parent=51 // pred_fallthru
                _
              // Predicated region
              $region89: #{decoder_forward.1} parent=51 // pred_check
                _
              $region90: #{decoder_forward.1} parent=51 // pred_check_branch
                %822 = sbr.rel target = $region92
              $region91: #{decoder_forward.1} parent=51 // pred_region
                _
              $region92: #{decoder_forward.1} parent=51 // pred_fallthru
                _
            $region52: #{decoder_forward.1} parent=47 // pred_fallthru
              _
            // Predicated region
            $region53: #{decoder_forward.1} parent=47 // pred_check
              _
            $region54: #{decoder_forward.1} parent=47 // pred_check_branch
              %669 = sbr.rel target = $region56
            $region55: #{decoder_forward.1} parent=47 // pred_region
              %s671 = sshrl.u32 %s658, 4
              // While loop
              $region57: #{decoder_forward.1} parent=55 // loop_pre_header
                _
              $region58: #{decoder_forward.1} parent=55 // loop_header
                %s673 = sphi 0, %s675
                %p674 = scmp.ge.s32.totalorder %s673, %s671
                %s678 = sphi 0, %s715
                %s679 = sphi %s651, %s718
                %s680 = sphi %s662, %s719
              $region59: #{decoder_forward.1} parent=55 // loop_header_branch
                %677 = sbr.rel (%p674) target = $region63
              $region60: #{decoder_forward.1} parent=55 // loop_body
                %v681 = vld [vmem:[%s679] sm:$0xff]
                %682 = vst [vmem:[%s680] sm:$0xff] %v681
                %v683 = vld [vmem:[%s679 + $0x8] sm:$0xff]
                %684 = vst [vmem:[%s680 + $0x8] sm:$0xff] %v683
                %v685 = vld [vmem:[%s679 + $0x10] sm:$0xff]
                %686 = vst [vmem:[%s680 + $0x10] sm:$0xff] %v685
                %v687 = vld [vmem:[%s679 + $0x18] sm:$0xff]
                %688 = vst [vmem:[%s680 + $0x18] sm:$0xff] %v687
                %v689 = vld [vmem:[%s679 + $0x20] sm:$0xff]
                %690 = vst [vmem:[%s680 + $0x20] sm:$0xff] %v689
                %v691 = vld [vmem:[%s679 + $0x28] sm:$0xff]
                %692 = vst [vmem:[%s680 + $0x28] sm:$0xff] %v691
                %v693 = vld [vmem:[%s679 + $0x30] sm:$0xff]
                %694 = vst [vmem:[%s680 + $0x30] sm:$0xff] %v693
                %v695 = vld [vmem:[%s679 + $0x38] sm:$0xff]
                %696 = vst [vmem:[%s680 + $0x38] sm:$0xff] %v695
                %v697 = vld [vmem:[%s679 + $0x40] sm:$0xff]
                %698 = vst [vmem:[%s680 + $0x40] sm:$0xff] %v697
                %v699 = vld [vmem:[%s679 + $0x48] sm:$0xff]
                %700 = vst [vmem:[%s680 + $0x48] sm:$0xff] %v699
                %v701 = vld [vmem:[%s679 + $0x50] sm:$0xff]
                %702 = vst [vmem:[%s680 + $0x50] sm:$0xff] %v701
                %v703 = vld [vmem:[%s679 + $0x58] sm:$0xff]
                %704 = vst [vmem:[%s680 + $0x58] sm:$0xff] %v703
                %v705 = vld [vmem:[%s679 + $0x60] sm:$0xff]
                %706 = vst [vmem:[%s680 + $0x60] sm:$0xff] %v705
                %v707 = vld [vmem:[%s679 + $0x68] sm:$0xff]
                %708 = vst [vmem:[%s680 + $0x68] sm:$0xff] %v707
                %v709 = vld [vmem:[%s679 + $0x70] sm:$0xff]
                %710 = vst [vmem:[%s680 + $0x70] sm:$0xff] %v709
                %v711 = vld [vmem:[%s679 + $0x78] sm:$0xff]
                %712 = vst [vmem:[%s680 + $0x78] sm:$0xff] %v711
                %s713 = sadd.s32 1, %s678
                %p714 = scmp.ge.s32.totalorder %s713, %s671
                %s715 = scalar_select %p714, 0, %s713
                %s716 = smul.u32 %s715, 128
                %s717 = smul.u32 %s715, 128
                %s718 = scalar_lea.vmem %s651, %s716 [#allocation2]
                %s719 = scalar_lea.vmem %s662, %s717
              $region61: #{decoder_forward.1} parent=55 // loop_footer
                %s675 = sadd.s32 %s673, 1
              $region62: #{decoder_forward.1} parent=55 // loop_footer_branch
                %672 = sbr.rel target = $region58
              $region63: #{decoder_forward.1} parent=55 // loop_exit
                _
              %s720 = sshrl.u32 %s658, 4
              %s721 = sand.u32 %s658, 15
              %s722 = smul.u32 %s720, 16
              %s723 = smul.u32 8, %s722
              %s724 = scalar_lea.vmem %s651, %s723 [#allocation2]
              %s725 = smul.u32 8, %s722
              %s726 = scalar_lea.vmem %s662, %s725
              // While loop
              $region64: #{decoder_forward.1} parent=55 // loop_pre_header
                _
              $region65: #{decoder_forward.1} parent=55 // loop_header
                %s728 = sphi 0, %s730
                %p729 = scmp.ge.s32.totalorder %s728, %s721
                %s733 = sphi 0, %s740
                %s734 = sphi %s724, %s743
                %s735 = sphi %s726, %s744
              $region66: #{decoder_forward.1} parent=55 // loop_header_branch
                %732 = sbr.rel (%p729) target = $region70
              $region67: #{decoder_forward.1} parent=55 // loop_body
                %v736 = vld [vmem:[%s734] sm:$0xff]
                %737 = vst [vmem:[%s735] sm:$0xff] %v736
                %s738 = sadd.s32 1, %s733
                %p739 = scmp.ge.s32.totalorder %s738, %s721
                %s740 = scalar_select %p739, 0, %s738
                %s741 = smul.u32 %s740, 8
                %s742 = smul.u32 %s740, 8
                %s743 = scalar_lea.vmem %s724, %s741 [#allocation2]
                %s744 = scalar_lea.vmem %s726, %s742
              $region68: #{decoder_forward.1} parent=55 // loop_footer
                %s730 = sadd.s32 %s728, 1
              $region69: #{decoder_forward.1} parent=55 // loop_footer_branch
                %727 = sbr.rel target = $region65
              $region70: #{decoder_forward.1} parent=55 // loop_exit
                _
            $region56: #{decoder_forward.1} parent=47 // pred_fallthru
              _
          $region48: #{decoder_forward.1} parent=43 // pred_fallthru
            _
          %823 = vnop
        $region44: #{decoder_forward.1} parent=39 // pred_fallthru
          _
      $region40: #{decoder_forward.1} parent=5 // pred_fallthru
        _
      %p824 = scmp.le.s32.totalorder 2, %s11
      // Predicated region
      $region93: #{decoder_forward.1} parent=5 // pred_check
        %p825 = pneg %p824
      $region94: #{decoder_forward.1} parent=5 // pred_check_branch
        %827 = sbr.rel (%p825) target = $region96
      $region95: #{decoder_forward.1} parent=5 // pred_region
        %s828 = ssub.s32 %s11, 2
        // Predicated region
        $region97: #{decoder_forward.1} parent=95 // pred_check
          %p829 = pneg %p150
        $region98: #{decoder_forward.1} parent=95 // pred_check_branch
          %831 = sbr.rel (%p829) target = $region100
        $region99: #{decoder_forward.1} parent=95 // pred_region
          %s832 = sand.u32 %s135, 1
          %s833 = sand.u32 %s135, 1
          %s834 = smul.addr %s833, 128
          %s835 = scalar_lea.vmem [#allocation2], %s834
        $region100: #{decoder_forward.1} parent=95 // pred_fallthru
          _
      $region96: #{decoder_forward.1} parent=5 // pred_fallthru
        _
    $region6: #{decoder_forward.1} parent=1 // loop_footer
      %s15 = sadd.s32 1, %s11
    $region7: #{decoder_forward.1} parent=1 // loop_footer_branch
      %10 = sbr.rel target = $region3
    $region8: #{decoder_forward.1} parent=1 // loop_exit
      _

</llo_original>
